<compile_context>
chip_gen: v5e
topology: v5e:2x2
jax: 0.10.0
libtpu: 0.0.40
codegen_flags: <defaults>
</compile_context>

<pallas_src>
import functools

import numpy as np

import jax
import jax.numpy as jnp
from jax import lax
from jax.experimental import pallas as pl
from jax.experimental.pallas import tpu as pltpu

_MXU_MIN_CHANNELS = 128  # below this, VPU broadcast-FMA channel mixing wins.


def _elu(v):
    # ELU(alpha=1); clamp the exp argument so the untaken branch cannot overflow.
    return jnp.where(v > 0, v, jnp.exp(jnp.minimum(v, 0.0)) - 1.0)


@functools.lru_cache(maxsize=None)
def _pltpu_roll_matches_jnp():
    """One-time probe: check pltpu.roll's lane-roll direction/lowering vs jnp.roll.

    If the probe fails (or disagrees), the kernel falls back to jnp.roll, which
    lowers to slice+concatenate and is guaranteed-correct (just slightly slower).
    """
    rows, cols, shift = 8, 384, 368  # multi-vreg lane roll, non-128 amount

    def kern(x_ref, o_ref):
        o_ref[...] = pltpu.roll(x_ref[...], shift=shift, axis=1)

    x = jnp.arange(rows * cols, dtype=jnp.float32).reshape(rows, cols)
    try:
        got = pl.pallas_call(
            kern, out_shape=jax.ShapeDtypeStruct((rows, cols), jnp.float32))(x)
        return bool(jnp.array_equal(got, jnp.roll(x, shift, axis=1)))
    except Exception:
        return False


def _shift_fwd(v, s, use_roll):
    """out[..., p] = v[..., (p + s) % M] for a static integer shift s (any sign)."""
    m = v.shape[-1]
    s = s % m
    if s == 0:
        return v
    if use_roll:
        return pltpu.roll(v, shift=m - s, axis=v.ndim - 1)
    return jnp.roll(v, m - s, axis=-1)


def _residual_block_kernel(*refs, ksize, pad, channels, width, tiled, use_roll):
    K, C, W = ksize, channels, width
    if tiled:
        xa_ref, xb_ref, m1_ref, m2_ref, w1_ref, w2_ref, o_ref = refs
    else:
        xa_ref, m1_ref, m2_ref, w1_ref, w2_ref, o_ref = refs
        xb_ref = None

    xa = xa_ref[0]                        # (C, M) f32, spatial flattened in lanes
    M = xa.shape[-1]
    xb = xb_ref[0] if tiled else None     # next H-tile of the padded input
    w1 = w1_ref[...]                      # (K, Cin, Cout, 1)
    w2 = w2_ref[...]

    def channel_mix(acc, tap, w, k):
        # acc[co, p] += sum_ci w[k, ci, co] * tap[ci, p]
        if C >= _MXU_MIN_CHANNELS:
            wk = jnp.transpose(w[k, :, :, 0])                 # (Cout, Cin)
            contrib = jnp.dot(wk, tap, preferred_element_type=jnp.float32)
        else:
            contrib = None
            for ci in range(C):
                term = w[k, ci] * tap[ci:ci + 1, :]           # (Cout,1)*(1,M)
                contrib = term if contrib is None else contrib + term
        return contrib if acc is None else acc + contrib

    # ---- conv1: (K, 1) conv along H (H shift == lane shift by multiples of W) --
    acc1 = None
    x_res = None
    for k in range(K):
        if tiled:
            s = k * W                      # offset into the H-padded A|B pair
            if s == 0:
                tap = xa
            elif s == M:
                tap = xb
            else:
                sel = m1_ref[k]            # (1, M): 1.0 -> block A, 0.0 -> block B
                tap = (_shift_fwd(xa, s, use_roll) * sel +
                       _shift_fwd(xb, s, use_roll) * (1.0 - sel))
        else:
            s = (k - pad) * W
            if s == 0:
                tap = xa
            else:
                tap = _shift_fwd(xa, s, use_roll) * m1_ref[k]  # image-border mask
        if k == pad:
            x_res = tap                    # the un-shifted x tile (residual)
        acc1 = channel_mix(acc1, tap, w1, k)

    y = _elu(acc1)

    # ---- conv2: (1, K) conv along W (unit lane shifts, W-edge masks) -----------
    acc2 = None
    for k in range(K):
        d = k - pad
        tap = y if d == 0 else _shift_fwd(y, d, use_roll) * m2_ref[k]
        acc2 = channel_mix(acc2, tap, w2, k)

    # ---- residual add + final ELU, all f32 -------------------------------------
    o_ref[0] = _elu(acc2 + x_res).astype(o_ref.dtype)


def _vmem_budgets():
    phys = 64 * 1024 * 1024  # conservative default (v7x per-core VMEM)
    try:
        info = pltpu.get_tpu_info()
        for name in ("vmem_capacity_bytes", "vmem_bytes", "vmem_size_bytes"):
            val = getattr(info, name, None)
            if val:
                phys = int(val)
                break
    except Exception:
        pass
    workset_budget = phys // 4                               # 16 MiB v7x / 32 MiB v5e,v6e
    vmem_limit = int(min((phys * 3) // 4, 96 * 1024 * 1024))  # 48 MiB v7x / 96 MiB v5e,v6e
    return workset_budget, vmem_limit


def _step_bytes(C, th, W, tiled):
    # Rough per-grid-step VMEM working set: double-buffered IO blocks plus the
    # live f32 temporaries (taps / accumulators / residual).
    slabs = 24 if tiled else 20
    return slabs * C * th * W * 4


def _legal_tile(H, W, pad, th):
    return (th == H) or (H % th == 0 and th >= 2 * pad and (th * W) % 128 == 0)


def _choose_tile_h(N, C, H, W, pad, budget):
    fits_whole = _step_bytes(C, H, W, False) <= budget
    cands = [th for th in range(H - 1, 0, -1)
             if H % th == 0 and th >= 2 * pad and (th * W) % 128 == 0]
    fitting = [th for th in cands if _step_bytes(C, th, W, True) <= budget]
    if N >= 2:
        if fits_whole:
            return H
        if fitting:
            return fitting[0]
        return cands[-1] if cands else H
    # N == 1: prefer >= 2 grid steps so both v7x TensorCores get work.
    if fitting:
        return fitting[0]
    if fits_whole:
        return H
    return cands[-1] if cands else H


def residual_block_forward(x_nchw, conv1_weight, conv2_weight, *, tile_h=None):
    """Forward pass of `residual_block`.

    x: (N, C, H, W) f32; conv1_weight: (C, C, K, 1); conv2_weight: (C, C, 1, K).
    Returns (N, C, H, W) f32.
    """
    N, C, H, W = x_nchw.shape
    K = conv1_weight.shape[2]
    assert conv1_weight.shape == (C, C, K, 1)
    assert conv2_weight.shape == (C, C, 1, K)
    assert K % 2 == 1, "kernel_size must be odd"
    pad = (K - 1) // 2

    budget, vmem_limit = _vmem_budgets()
    if tile_h is None:
        th = _choose_tile_h(N, C, H, W, pad, budget)
    else:
        th = int(tile_h)
        assert _legal_tile(H, W, pad, th), (
            "tile_h must equal H, or divide H with tile_h >= kernel_size - 1 "
            "and tile_h * W a multiple of 128")
    nh = H // th
    tiled = nh > 1
    M = th * W

    x = x_nchw.astype(jnp.float32)
    # (Cout, Cin, K, 1)/(Cout, Cin, 1, K) -> (K, Cin, Cout, 1): the kernel reads
    # the (Cout, 1) column for tap k / input channel ci with one static slice.
    w1r = jnp.transpose(conv1_weight[:, :, :, 0].astype(jnp.float32),
                        (2, 1, 0))[..., None]
    w2r = jnp.transpose(conv2_weight[:, :, 0, :].astype(jnp.float32),
                        (2, 1, 0))[..., None]

    # Grid-invariant multiplicative edge masks, built once on the host.
    p = np.arange(M)
    wp = p % W
    mask2 = np.stack([(wp + (k - pad) >= 0) & (wp + (k - pad) < W)
                      for k in range(K)])
    mask2 = jnp.asarray(mask2.astype(np.float32)[:, None, :])            # (K,1,M)
    if tiled:
        mask1 = np.stack([p < M - k * W for k in range(K)])
    else:
        mask1 = np.stack([(p + (k - pad) * W >= 0) & (p + (k - pad) * W < M)
                          for k in range(K)])
    mask1 = jnp.asarray(mask1.astype(np.float32)[:, None, :])            # (K,1,M)

    kernel = functools.partial(
        _residual_block_kernel, ksize=K, pad=pad, channels=C, width=W,
        tiled=tiled, use_roll=_pltpu_roll_matches_jnp())

    if not tiled:
        grid = (N,)
        in_specs = [
            pl.BlockSpec((1, C, M), lambda n: (n, 0, 0)),
            pl.BlockSpec((K, 1, M), lambda n: (0, 0, 0)),
            pl.BlockSpec((K, 1, M), lambda n: (0, 0, 0)),
            pl.BlockSpec((K, C, C, 1), lambda n: (0, 0, 0, 0)),
            pl.BlockSpec((K, C, C, 1), lambda n: (0, 0, 0, 0)),
        ]
        out_spec = pl.BlockSpec((1, C, M), lambda n: (n, 0, 0))
        operands = (x.reshape(N, C, H * W), mask1, mask2, w1r, w2r)
        dim_sem = ("parallel",)
    else:
        hp = (nh + 1) * th                      # pad rows on top, th - pad below
        x_pad = jnp.pad(x, ((0, 0), (0, 0), (pad, hp - H - pad), (0, 0)))
        x_pad = x_pad.reshape(N, C, hp * W)
        grid = (N, nh)
        in_specs = [
            pl.BlockSpec((1, C, M), lambda n, t: (n, 0, t)),      # block A (own)
            pl.BlockSpec((1, C, M), lambda n, t: (n, 0, t + 1)),  # block B (next)
            pl.BlockSpec((K, 1, M), lambda n, t: (0, 0, 0)),
            pl.BlockSpec((K, 1, M), lambda n, t: (0, 0, 0)),
            pl.BlockSpec((K, C, C, 1), lambda n, t: (0, 0, 0, 0)),
            pl.BlockSpec((K, C, C, 1), lambda n, t: (0, 0, 0, 0)),
        ]
        out_spec = pl.BlockSpec((1, C, M), lambda n, t: (n, 0, t))
        operands = (x_pad, x_pad, mask1, mask2, w1r, w2r)
        dim_sem = ("parallel", "parallel")

    out_flat = pl.pallas_call(
        kernel,
        out_shape=jax.ShapeDtypeStruct((N, C, H * W), jnp.float32),
        grid=grid,
        in_specs=in_specs,
        out_specs=out_spec,
        compiler_params=pltpu.CompilerParams(
            dimension_semantics=dim_sem, vmem_limit_bytes=vmem_limit),
    )(*operands)
    return out_flat.reshape(N, C, H, W)


def _reference_forward(x_nchw, w1, w2):
    """Pure-JAX reference matching the PyTorch forward exactly (NCHW, f32)."""
    K = w1.shape[2]
    pad = (K - 1) // 2
    dn = ("NCHW", "OIHW", "NCHW")
    y = lax.conv_general_dilated(
        x_nchw, w1, (1, 1), ((pad, pad), (0, 0)), dimension_numbers=dn,
        precision=lax.Precision.HIGHEST)
    y = _elu(y)
    z = lax.conv_general_dilated(
        y, w2, (1, 1), ((0, 0), (pad, pad)), dimension_numbers=dn,
        precision=lax.Precision.HIGHEST)
    return _elu(z + x_nchw)


if __name__ == "__main__":
    def run_case(N, C, H, W, K, tile_h=None):
        key = jax.random.PRNGKey(0)
        kx, k1, k2 = jax.random.split(key, 3)
        x = jax.random.normal(kx, (N, C, H, W), dtype=jnp.float32)
        bound = 1.0 / np.sqrt(C * K)
        w1 = jax.random.uniform(k1, (C, C, K, 1), jnp.float32, -bound, bound)
        w2 = jax.random.uniform(k2, (C, C, 1, K), jnp.float32, -bound, bound)

        ref = jax.block_until_ready(_reference_forward(x, w1, w2))
        out = jax.block_until_ready(
            residual_block_forward(x, w1, w2, tile_h=tile_h))
        np.testing.assert_allclose(np.asarray(out), np.asarray(ref),
                                   rtol=1e-4, atol=1e-4)

    # Module-consistent demo shape: batch=2, in_planes=4, 16x16 image, K=3.
    run_case(2, 4, 16, 16, 3)
    # N=1 auto-splits H so both v7x TensorCores get a grid step (tiled path).
    run_case(1, 4, 16, 16, 3)
    # Explicit H-tiling (2 tiles of 16 rows) exercises the padded A/B halo path.
    run_case(2, 8, 32, 16, 3, tile_h=16)
    # Wider stencil (kernel_size=5, pad=2), single-block path.
    run_case(2, 4, 16, 16, 5)

    print("KERNEL_OK")
</pallas_src>

<mosaic_0001>
module attributes {stable_mosaic.version = 11 : i64} {
  func.func @kern(%arg0: memref<8x384xf32, #tpu.memory_space<vmem>>, %arg1: memref<8x384xf32, #tpu.memory_space<vmem>>) attributes {dimension_semantics = [], scalar_prefetch = 0 : i64, scratch_operands = 0 : i64, tpu.core_type = #tpu.core_type<tc>} {
    %c0 = arith.constant 0 : index
    %c0_0 = arith.constant 0 : index
    %0 = vector.load %arg0[%c0, %c0_0] : memref<8x384xf32, #tpu.memory_space<vmem>>, vector<8x384xf32>
    %c368_i32 = arith.constant 368 : i32
    %1 = tpu.dynamic_rotate %0 by %c368_i32 dim 1 : vector<8x384xf32>, i32 -> vector<8x384xf32>
    %c0_1 = arith.constant 0 : index
    %c0_2 = arith.constant 0 : index
    %2 = vector.load %arg1[%c0_1, %c0_2] : memref<8x384xf32, #tpu.memory_space<vmem>>, vector<8x384xf32>
    tpu.vector_store %arg1[%c0_1, %c0_2], %1 {strides = array<i32>} : memref<8x384xf32, #tpu.memory_space<vmem>>, vector<8x384xf32>,
    return
  }
}

module attributes {stable_mosaic.version = 11 : i64} {
  func.func @_residual_block_kernel(%arg0: i32, %arg1: memref<1x4x256xf32, #tpu.memory_space<vmem>>, %arg2: memref<3x1x256xf32, #tpu.memory_space<vmem>>, %arg3: memref<3x1x256xf32, #tpu.memory_space<vmem>>, %arg4: memref<3x4x4x1xf32, #tpu.memory_space<vmem>>, %arg5: memref<3x4x4x1xf32, #tpu.memory_space<vmem>>, %arg6: memref<1x4x256xf32, #tpu.memory_space<vmem>>) attributes {dimension_semantics = [#tpu.dimension_semantics<parallel>], iteration_bounds = array<i64: 2>, scalar_prefetch = 0 : i64, scratch_operands = 0 : i64, tpu.core_type = #tpu.core_type<tc>, window_params = [{transform_indices = @transform_0, window_bounds = array<i64: 1, 4, 256>}, {pipeline_mode = #tpu.pipeline_mode<synchronous>, transform_indices = @transform_1, window_bounds = array<i64: 3, 1, 256>}, {pipeline_mode = #tpu.pipeline_mode<synchronous>, transform_indices = @transform_2, window_bounds = array<i64: 3, 1, 256>}, {pipeline_mode = #tpu.pipeline_mode<synchronous>, transform_indices = @transform_3, window_bounds = array<i64: 3, 4, 4, 1>}, {pipeline_mode = #tpu.pipeline_mode<synchronous>, transform_indices = @transform_4, window_bounds = array<i64: 3, 4, 4, 1>}, {transform_indices = @transform_5, window_bounds = array<i64: 1, 4, 256>}]} {
    %c0 = arith.constant 0 : index
    %c0_0 = arith.constant 0 : index
    %c0_1 = arith.constant 0 : index
    %0 = vector.load %arg1[%c0, %c0_0, %c0_1] : memref<1x4x256xf32, #tpu.memory_space<vmem>>, vector<1x4x256xf32>
    %1 = vector.shape_cast %0 : vector<1x4x256xf32> to vector<4x256xf32>
    %c0_2 = arith.constant 0 : index
    %c0_3 = arith.constant 0 : index
    %c0_4 = arith.constant 0 : index
    %c0_5 = arith.constant 0 : index
    %2 = vector.load %arg4[%c0_2, %c0_3, %c0_4, %c0_5] : memref<3x4x4x1xf32, #tpu.memory_space<vmem>>, vector<3x4x4x1xf32>
    %c0_6 = arith.constant 0 : index
    %c0_7 = arith.constant 0 : index
    %c0_8 = arith.constant 0 : index
    %c0_9 = arith.constant 0 : index
    %3 = vector.load %arg5[%c0_6, %c0_7, %c0_8, %c0_9] : memref<3x4x4x1xf32, #tpu.memory_space<vmem>>, vector<3x4x4x1xf32>
    %4 = vector.extract_strided_slice %1 {offsets = [0, 240], sizes = [4, 16], strides = [1, 1]} : vector<4x256xf32> to vector<4x16xf32>
    %5 = vector.extract_strided_slice %1 {offsets = [0, 0], sizes = [4, 240], strides = [1, 1]} : vector<4x256xf32> to vector<4x240xf32>
    %6 = tpu.concatenate %4, %5 in 1 : vector<4x16xf32>, vector<4x240xf32> -> vector<4x256xf32>
    %c0_10 = arith.constant 0 : index
    %c0_11 = arith.constant 0 : index
    %c0_12 = arith.constant 0 : index
    %7 = vector.load %arg2[%c0_10, %c0_11, %c0_12] : memref<3x1x256xf32, #tpu.memory_space<vmem>>, vector<1x1x256xf32>
    %8 = vector.shape_cast %7 : vector<1x1x256xf32> to vector<1x256xf32>
    %9 = vector.broadcast %8 : vector<1x256xf32> to vector<4x256xf32>
    %10 = arith.mulf %6, %9 : vector<4x256xf32>
    %11 = vector.extract_strided_slice %2 {offsets = [0, 0, 0, 0], sizes = [1, 1, 4, 1], strides = [1, 1, 1, 1]} : vector<3x4x4x1xf32> to vector<1x1x4x1xf32>
    %12 = vector.shape_cast %11 : vector<1x1x4x1xf32> to vector<4x1xf32>
    %13 = vector.extract_strided_slice %10 {offsets = [0, 0], sizes = [1, 256], strides = [1, 1]} : vector<4x256xf32> to vector<1x256xf32>
    %14 = vector.broadcast %12 : vector<4x1xf32> to vector<4x256xf32>
    %15 = vector.broadcast %13 : vector<1x256xf32> to vector<4x256xf32>
    %16 = arith.mulf %14, %15 : vector<4x256xf32>
    %17 = vector.extract_strided_slice %2 {offsets = [0, 1, 0, 0], sizes = [1, 1, 4, 1], strides = [1, 1, 1, 1]} : vector<3x4x4x1xf32> to vector<1x1x4x1xf32>
    %18 = vector.shape_cast %17 : vector<1x1x4x1xf32> to vector<4x1xf32>
    %19 = vector.extract_strided_slice %10 {offsets = [1, 0], sizes = [1, 256], strides = [1, 1]} : vector<4x256xf32> to vector<1x256xf32>
    %20 = vector.broadcast %18 : vector<4x1xf32> to vector<4x256xf32>
    %21 = vector.broadcast %19 : vector<1x256xf32> to vector<4x256xf32>
    %22 = arith.mulf %20, %21 : vector<4x256xf32>
    %23 = arith.addf %16, %22 : vector<4x256xf32>
    %24 = vector.extract_strided_slice %2 {offsets = [0, 2, 0, 0], sizes = [1, 1, 4, 1], strides = [1, 1, 1, 1]} : vector<3x4x4x1xf32> to vector<1x1x4x1xf32>
    %25 = vector.shape_cast %24 : vector<1x1x4x1xf32> to vector<4x1xf32>
    %26 = vector.extract_strided_slice %10 {offsets = [2, 0], sizes = [1, 256], strides = [1, 1]} : vector<4x256xf32> to vector<1x256xf32>
    %27 = vector.broadcast %25 : vector<4x1xf32> to vector<4x256xf32>
    %28 = vector.broadcast %26 : vector<1x256xf32> to vector<4x256xf32>
    %29 = arith.mulf %27, %28 : vector<4x256xf32>
    %30 = arith.addf %23, %29 : vector<4x256xf32>
    %31 = vector.extract_strided_slice %2 {offsets = [0, 3, 0, 0], sizes = [1, 1, 4, 1], strides = [1, 1, 1, 1]} : vector<3x4x4x1xf32> to vector<1x1x4x1xf32>
    %32 = vector.shape_cast %31 : vector<1x1x4x1xf32> to vector<4x1xf32>
    %33 = vector.extract_strided_slice %10 {offsets = [3, 0], sizes = [1, 256], strides = [1, 1]} : vector<4x256xf32> to vector<1x256xf32>
    %34 = vector.broadcast %32 : vector<4x1xf32> to vector<4x256xf32>
    %35 = vector.broadcast %33 : vector<1x256xf32> to vector<4x256xf32>
    %36 = arith.mulf %34, %35 : vector<4x256xf32>
    %37 = arith.addf %30, %36 : vector<4x256xf32>
    %38 = vector.extract_strided_slice %2 {offsets = [1, 0, 0, 0], sizes = [1, 1, 4, 1], strides = [1, 1, 1, 1]} : vector<3x4x4x1xf32> to vector<1x1x4x1xf32>
    %39 = vector.shape_cast %38 : vector<1x1x4x1xf32> to vector<4x1xf32>
    %40 = vector.extract_strided_slice %1 {offsets = [0, 0], sizes = [1, 256], strides = [1, 1]} : vector<4x256xf32> to vector<1x256xf32>
    %41 = vector.broadcast %39 : vector<4x1xf32> to vector<4x256xf32>
    %42 = vector.broadcast %40 : vector<1x256xf32> to vector<4x256xf32>
    %43 = arith.mulf %41, %42 : vector<4x256xf32>
    %44 = vector.extract_strided_slice %2 {offsets = [1, 1, 0, 0], sizes = [1, 1, 4, 1], strides = [1, 1, 1, 1]} : vector<3x4x4x1xf32> to vector<1x1x4x1xf32>
    %45 = vector.shape_cast %44 : vector<1x1x4x1xf32> to vector<4x1xf32>
    %46 = vector.extract_strided_slice %1 {offsets = [1, 0], sizes = [1, 256], strides = [1, 1]} : vector<4x256xf32> to vector<1x256xf32>
    %47 = vector.broadcast %45 : vector<4x1xf32> to vector<4x256xf32>
    %48 = vector.broadcast %46 : vector<1x256xf32> to vector<4x256xf32>
    %49 = arith.mulf %47, %48 : vector<4x256xf32>
    %50 = arith.addf %43, %49 : vector<4x256xf32>
    %51 = vector.extract_strided_slice %2 {offsets = [1, 2, 0, 0], sizes = [1, 1, 4, 1], strides = [1, 1, 1, 1]} : vector<3x4x4x1xf32> to vector<1x1x4x1xf32>
    %52 = vector.shape_cast %51 : vector<1x1x4x1xf32> to vector<4x1xf32>
    %53 = vector.extract_strided_slice %1 {offsets = [2, 0], sizes = [1, 256], strides = [1, 1]} : vector<4x256xf32> to vector<1x256xf32>
    %54 = vector.broadcast %52 : vector<4x1xf32> to vector<4x256xf32>
    %55 = vector.broadcast %53 : vector<1x256xf32> to vector<4x256xf32>
    %56 = arith.mulf %54, %55 : vector<4x256xf32>
    %57 = arith.addf %50, %56 : vector<4x256xf32>
    %58 = vector.extract_strided_slice %2 {offsets = [1, 3, 0, 0], sizes = [1, 1, 4, 1], strides = [1, 1, 1, 1]} : vector<3x4x4x1xf32> to vector<1x1x4x1xf32>
    %59 = vector.shape_cast %58 : vector<1x1x4x1xf32> to vector<4x1xf32>
    %60 = vector.extract_strided_slice %1 {offsets = [3, 0], sizes = [1, 256], strides = [1, 1]} : vector<4x256xf32> to vector<1x256xf32>
    %61 = vector.broadcast %59 : vector<4x1xf32> to vector<4x256xf32>
    %62 = vector.broadcast %60 : vector<1x256xf32> to vector<4x256xf32>
    %63 = arith.mulf %61, %62 : vector<4x256xf32>
    %64 = arith.addf %57, %63 : vector<4x256xf32>
    %65 = arith.addf %37, %64 : vector<4x256xf32>
    %66 = vector.extract_strided_slice %1 {offsets = [0, 16], sizes = [4, 240], strides = [1, 1]} : vector<4x256xf32> to vector<4x240xf32>
    %67 = vector.extract_strided_slice %1 {offsets = [0, 0], sizes = [4, 16], strides = [1, 1]} : vector<4x256xf32> to vector<4x16xf32>
    %68 = tpu.concatenate %66, %67 in 1 : vector<4x240xf32>, vector<4x16xf32> -> vector<4x256xf32>
    %c2 = arith.constant 2 : index
    %c0_13 = arith.constant 0 : index
    %c0_14 = arith.constant 0 : index
    %69 = vector.load %arg2[%c2, %c0_13, %c0_14] : memref<3x1x256xf32, #tpu.memory_space<vmem>>, vector<1x1x256xf32>
    %70 = vector.shape_cast %69 : vector<1x1x256xf32> to vector<1x256xf32>
    %71 = vector.broadcast %70 : vector<1x256xf32> to vector<4x256xf32>
    %72 = arith.mulf %68, %71 : vector<4x256xf32>
    %73 = vector.extract_strided_slice %2 {offsets = [2, 0, 0, 0], sizes = [1, 1, 4, 1], strides = [1, 1, 1, 1]} : vector<3x4x4x1xf32> to vector<1x1x4x1xf32>
    %74 = vector.shape_cast %73 : vector<1x1x4x1xf32> to vector<4x1xf32>
    %75 = vector.extract_strided_slice %72 {offsets = [0, 0], sizes = [1, 256], strides = [1, 1]} : vector<4x256xf32> to vector<1x256xf32>
    %76 = vector.broadcast %74 : vector<4x1xf32> to vector<4x256xf32>
    %77 = vector.broadcast %75 : vector<1x256xf32> to vector<4x256xf32>
    %78 = arith.mulf %76, %77 : vector<4x256xf32>
    %79 = vector.extract_strided_slice %2 {offsets = [2, 1, 0, 0], sizes = [1, 1, 4, 1], strides = [1, 1, 1, 1]} : vector<3x4x4x1xf32> to vector<1x1x4x1xf32>
    %80 = vector.shape_cast %79 : vector<1x1x4x1xf32> to vector<4x1xf32>
    %81 = vector.extract_strided_slice %72 {offsets = [1, 0], sizes = [1, 256], strides = [1, 1]} : vector<4x256xf32> to vector<1x256xf32>
    %82 = vector.broadcast %80 : vector<4x1xf32> to vector<4x256xf32>
    %83 = vector.broadcast %81 : vector<1x256xf32> to vector<4x256xf32>
    %84 = arith.mulf %82, %83 : vector<4x256xf32>
    %85 = arith.addf %78, %84 : vector<4x256xf32>
    %86 = vector.extract_strided_slice %2 {offsets = [2, 2, 0, 0], sizes = [1, 1, 4, 1], strides = [1, 1, 1, 1]} : vector<3x4x4x1xf32> to vector<1x1x4x1xf32>
    %87 = vector.shape_cast %86 : vector<1x1x4x1xf32> to vector<4x1xf32>
    %88 = vector.extract_strided_slice %72 {offsets = [2, 0], sizes = [1, 256], strides = [1, 1]} : vector<4x256xf32> to vector<1x256xf32>
    %89 = vector.broadcast %87 : vector<4x1xf32> to vector<4x256xf32>
    %90 = vector.broadcast %88 : vector<1x256xf32> to vector<4x256xf32>
    %91 = arith.mulf %89, %90 : vector<4x256xf32>
    %92 = arith.addf %85, %91 : vector<4x256xf32>
    %93 = vector.extract_strided_slice %2 {offsets = [2, 3, 0, 0], sizes = [1, 1, 4, 1], strides = [1, 1, 1, 1]} : vector<3x4x4x1xf32> to vector<1x1x4x1xf32>
    %94 = vector.shape_cast %93 : vector<1x1x4x1xf32> to vector<4x1xf32>
    %95 = vector.extract_strided_slice %72 {offsets = [3, 0], sizes = [1, 256], strides = [1, 1]} : vector<4x256xf32> to vector<1x256xf32>
    %96 = vector.broadcast %94 : vector<4x1xf32> to vector<4x256xf32>
    %97 = vector.broadcast %95 : vector<1x256xf32> to vector<4x256xf32>
    %98 = arith.mulf %96, %97 : vector<4x256xf32>
    %99 = arith.addf %92, %98 : vector<4x256xf32>
    %100 = arith.addf %65, %99 : vector<4x256xf32>
    %cst = arith.constant 0.000000e+00 : f32
    %101 = vector.broadcast %cst : f32 to vector<4x256xf32>
    %102 = arith.cmpf ogt, %100, %101 : vector<4x256xf32>
    %cst_15 = arith.constant 0.000000e+00 : f32
    %103 = vector.broadcast %cst_15 : f32 to vector<4x256xf32>
    %104 = arith.minimumf %100, %103 : vector<4x256xf32>
    %105 = math.exp %104 : vector<4x256xf32>
    %cst_16 = arith.constant 1.000000e+00 : f32
    %106 = vector.broadcast %cst_16 : f32 to vector<4x256xf32>
    %107 = arith.subf %105, %106 : vector<4x256xf32>
    %108 = arith.select %102, %100, %107 : vector<4x256xi1>, vector<4x256xf32>
    %109 = vector.extract_strided_slice %108 {offsets = [0, 255], sizes = [4, 1], strides = [1, 1]} : vector<4x256xf32> to vector<4x1xf32>
    %110 = vector.extract_strided_slice %108 {offsets = [0, 0], sizes = [4, 255], strides = [1, 1]} : vector<4x256xf32> to vector<4x255xf32>
    %111 = tpu.concatenate %109, %110 in 1 : vector<4x1xf32>, vector<4x255xf32> -> vector<4x256xf32>
    %c0_17 = arith.constant 0 : index
    %c0_18 = arith.constant 0 : index
    %c0_19 = arith.constant 0 : index
    %112 = vector.load %arg3[%c0_17, %c0_18, %c0_19] : memref<3x1x256xf32, #tpu.memory_space<vmem>>, vector<1x1x256xf32>
    %113 = vector.shape_cast %112 : vector<1x1x256xf32> to vector<1x256xf32>
    %114 = vector.broadcast %113 : vector<1x256xf32> to vector<4x256xf32>
    %115 = arith.mulf %111, %114 : vector<4x256xf32>
    %116 = vector.extract_strided_slice %3 {offsets = [0, 0, 0, 0], sizes = [1, 1, 4, 1], strides = [1, 1, 1, 1]} : vector<3x4x4x1xf32> to vector<1x1x4x1xf32>
    %117 = vector.shape_cast %116 : vector<1x1x4x1xf32> to vector<4x1xf32>
    %118 = vector.extract_strided_slice %115 {offsets = [0, 0], sizes = [1, 256], strides = [1, 1]} : vector<4x256xf32> to vector<1x256xf32>
    %119 = vector.broadcast %117 : vector<4x1xf32> to vector<4x256xf32>
    %120 = vector.broadcast %118 : vector<1x256xf32> to vector<4x256xf32>
    %121 = arith.mulf %119, %120 : vector<4x256xf32>
    %122 = vector.extract_strided_slice %3 {offsets = [0, 1, 0, 0], sizes = [1, 1, 4, 1], strides = [1, 1, 1, 1]} : vector<3x4x4x1xf32> to vector<1x1x4x1xf32>
    %123 = vector.shape_cast %122 : vector<1x1x4x1xf32> to vector<4x1xf32>
    %124 = vector.extract_strided_slice %115 {offsets = [1, 0], sizes = [1, 256], strides = [1, 1]} : vector<4x256xf32> to vector<1x256xf32>
    %125 = vector.broadcast %123 : vector<4x1xf32> to vector<4x256xf32>
    %126 = vector.broadcast %124 : vector<1x256xf32> to vector<4x256xf32>
    %127 = arith.mulf %125, %126 : vector<4x256xf32>
    %128 = arith.addf %121, %127 : vector<4x256xf32>
    %129 = vector.extract_strided_slice %3 {offsets = [0, 2, 0, 0], sizes = [1, 1, 4, 1], strides = [1, 1, 1, 1]} : vector<3x4x4x1xf32> to vector<1x1x4x1xf32>
    %130 = vector.shape_cast %129 : vector<1x1x4x1xf32> to vector<4x1xf32>
    %131 = vector.extract_strided_slice %115 {offsets = [2, 0], sizes = [1, 256], strides = [1, 1]} : vector<4x256xf32> to vector<1x256xf32>
    %132 = vector.broadcast %130 : vector<4x1xf32> to vector<4x256xf32>
    %133 = vector.broadcast %131 : vector<1x256xf32> to vector<4x256xf32>
    %134 = arith.mulf %132, %133 : vector<4x256xf32>
    %135 = arith.addf %128, %134 : vector<4x256xf32>
    %136 = vector.extract_strided_slice %3 {offsets = [0, 3, 0, 0], sizes = [1, 1, 4, 1], strides = [1, 1, 1, 1]} : vector<3x4x4x1xf32> to vector<1x1x4x1xf32>
    %137 = vector.shape_cast %136 : vector<1x1x4x1xf32> to vector<4x1xf32>
    %138 = vector.extract_strided_slice %115 {offsets = [3, 0], sizes = [1, 256], strides = [1, 1]} : vector<4x256xf32> to vector<1x256xf32>
    %139 = vector.broadcast %137 : vector<4x1xf32> to vector<4x256xf32>
    %140 = vector.broadcast %138 : vector<1x256xf32> to vector<4x256xf32>
    %141 = arith.mulf %139, %140 : vector<4x256xf32>
    %142 = arith.addf %135, %141 : vector<4x256xf32>
    %143 = vector.extract_strided_slice %3 {offsets = [1, 0, 0, 0], sizes = [1, 1, 4, 1], strides = [1, 1, 1, 1]} : vector<3x4x4x1xf32> to vector<1x1x4x1xf32>
    %144 = vector.shape_cast %143 : vector<1x1x4x1xf32> to vector<4x1xf32>
    %145 = vector.extract_strided_slice %108 {offsets = [0, 0], sizes = [1, 256], strides = [1, 1]} : vector<4x256xf32> to vector<1x256xf32>
    %146 = vector.broadcast %144 : vector<4x1xf32> to vector<4x256xf32>
    %147 = vector.broadcast %145 : vector<1x256xf32> to vector<4x256xf32>
    %148 = arith.mulf %146, %147 : vector<4x256xf32>
    %149 = vector.extract_strided_slice %3 {offsets = [1, 1, 0, 0], sizes = [1, 1, 4, 1], strides = [1, 1, 1, 1]} : vector<3x4x4x1xf32> to vector<1x1x4x1xf32>
    %150 = vector.shape_cast %149 : vector<1x1x4x1xf32> to vector<4x1xf32>
    %151 = vector.extract_strided_slice %108 {offsets = [1, 0], sizes = [1, 256], strides = [1, 1]} : vector<4x256xf32> to vector<1x256xf32>
    %152 = vector.broadcast %150 : vector<4x1xf32> to vector<4x256xf32>
    %153 = vector.broadcast %151 : vector<1x256xf32> to vector<4x256xf32>
    %154 = arith.mulf %152, %153 : vector<4x256xf32>
    %155 = arith.addf %148, %154 : vector<4x256xf32>
    %156 = vector.extract_strided_slice %3 {offsets = [1, 2, 0, 0], sizes = [1, 1, 4, 1], strides = [1, 1, 1, 1]} : vector<3x4x4x1xf32> to vector<1x1x4x1xf32>
    %157 = vector.shape_cast %156 : vector<1x1x4x1xf32> to vector<4x1xf32>
    %158 = vector.extract_strided_slice %108 {offsets = [2, 0], sizes = [1, 256], strides = [1, 1]} : vector<4x256xf32> to vector<1x256xf32>
    %159 = vector.broadcast %157 : vector<4x1xf32> to vector<4x256xf32>
    %160 = vector.broadcast %158 : vector<1x256xf32> to vector<4x256xf32>
    %161 = arith.mulf %159, %160 : vector<4x256xf32>
    %162 = arith.addf %155, %161 : vector<4x256xf32>
    %163 = vector.extract_strided_slice %3 {offsets = [1, 3, 0, 0], sizes = [1, 1, 4, 1], strides = [1, 1, 1, 1]} : vector<3x4x4x1xf32> to vector<1x1x4x1xf32>
    %164 = vector.shape_cast %163 : vector<1x1x4x1xf32> to vector<4x1xf32>
    %165 = vector.extract_strided_slice %108 {offsets = [3, 0], sizes = [1, 256], strides = [1, 1]} : vector<4x256xf32> to vector<1x256xf32>
    %166 = vector.broadcast %164 : vector<4x1xf32> to vector<4x256xf32>
    %167 = vector.broadcast %165 : vector<1x256xf32> to vector<4x256xf32>
    %168 = arith.mulf %166, %167 : vector<4x256xf32>
    %169 = arith.addf %162, %168 : vector<4x256xf32>
    %170 = arith.addf %142, %169 : vector<4x256xf32>
    %171 = vector.extract_strided_slice %108 {offsets = [0, 1], sizes = [4, 255], strides = [1, 1]} : vector<4x256xf32> to vector<4x255xf32>
    %172 = vector.extract_strided_slice %108 {offsets = [0, 0], sizes = [4, 1], strides = [1, 1]} : vector<4x256xf32> to vector<4x1xf32>
    %173 = tpu.concatenate %171, %172 in 1 : vector<4x255xf32>, vector<4x1xf32> -> vector<4x256xf32>
    %c2_20 = arith.constant 2 : index
    %c0_21 = arith.constant 0 : index
    %c0_22 = arith.constant 0 : index
    %174 = vector.load %arg3[%c2_20, %c0_21, %c0_22] : memref<3x1x256xf32, #tpu.memory_space<vmem>>, vector<1x1x256xf32>
    %175 = vector.shape_cast %174 : vector<1x1x256xf32> to vector<1x256xf32>
    %176 = vector.broadcast %175 : vector<1x256xf32> to vector<4x256xf32>
    %177 = arith.mulf %173, %176 : vector<4x256xf32>
    %178 = vector.extract_strided_slice %3 {offsets = [2, 0, 0, 0], sizes = [1, 1, 4, 1], strides = [1, 1, 1, 1]} : vector<3x4x4x1xf32> to vector<1x1x4x1xf32>
    %179 = vector.shape_cast %178 : vector<1x1x4x1xf32> to vector<4x1xf32>
    %180 = vector.extract_strided_slice %177 {offsets = [0, 0], sizes = [1, 256], strides = [1, 1]} : vector<4x256xf32> to vector<1x256xf32>
    %181 = vector.broadcast %179 : vector<4x1xf32> to vector<4x256xf32>
    %182 = vector.broadcast %180 : vector<1x256xf32> to vector<4x256xf32>
    %183 = arith.mulf %181, %182 : vector<4x256xf32>
    %184 = vector.extract_strided_slice %3 {offsets = [2, 1, 0, 0], sizes = [1, 1, 4, 1], strides = [1, 1, 1, 1]} : vector<3x4x4x1xf32> to vector<1x1x4x1xf32>
    %185 = vector.shape_cast %184 : vector<1x1x4x1xf32> to vector<4x1xf32>
    %186 = vector.extract_strided_slice %177 {offsets = [1, 0], sizes = [1, 256], strides = [1, 1]} : vector<4x256xf32> to vector<1x256xf32>
    %187 = vector.broadcast %185 : vector<4x1xf32> to vector<4x256xf32>
    %188 = vector.broadcast %186 : vector<1x256xf32> to vector<4x256xf32>
    %189 = arith.mulf %187, %188 : vector<4x256xf32>
    %190 = arith.addf %183, %189 : vector<4x256xf32>
    %191 = vector.extract_strided_slice %3 {offsets = [2, 2, 0, 0], sizes = [1, 1, 4, 1], strides = [1, 1, 1, 1]} : vector<3x4x4x1xf32> to vector<1x1x4x1xf32>
    %192 = vector.shape_cast %191 : vector<1x1x4x1xf32> to vector<4x1xf32>
    %193 = vector.extract_strided_slice %177 {offsets = [2, 0], sizes = [1, 256], strides = [1, 1]} : vector<4x256xf32> to vector<1x256xf32>
    %194 = vector.broadcast %192 : vector<4x1xf32> to vector<4x256xf32>
    %195 = vector.broadcast %193 : vector<1x256xf32> to vector<4x256xf32>
    %196 = arith.mulf %194, %195 : vector<4x256xf32>
    %197 = arith.addf %190, %196 : vector<4x256xf32>
    %198 = vector.extract_strided_slice %3 {offsets = [2, 3, 0, 0], sizes = [1, 1, 4, 1], strides = [1, 1, 1, 1]} : vector<3x4x4x1xf32> to vector<1x1x4x1xf32>
    %199 = vector.shape_cast %198 : vector<1x1x4x1xf32> to vector<4x1xf32>
    %200 = vector.extract_strided_slice %177 {offsets = [3, 0], sizes = [1, 256], strides = [1, 1]} : vector<4x256xf32> to vector<1x256xf32>
    %201 = vector.broadcast %199 : vector<4x1xf32> to vector<4x256xf32>
    %202 = vector.broadcast %200 : vector<1x256xf32> to vector<4x256xf32>
    %203 = arith.mulf %201, %202 : vector<4x256xf32>
    %204 = arith.addf %197, %203 : vector<4x256xf32>
    %205 = arith.addf %170, %204 : vector<4x256xf32>
    %206 = arith.addf %205, %1 : vector<4x256xf32>
    %cst_23 = arith.constant 0.000000e+00 : f32
    %207 = vector.broadcast %cst_23 : f32 to vector<4x256xf32>
    %208 = arith.cmpf ogt, %206, %207 : vector<4x256xf32>
    %cst_24 = arith.constant 0.000000e+00 : f32
    %209 = vector.broadcast %cst_24 : f32 to vector<4x256xf32>
    %210 = arith.minimumf %206, %209 : vector<4x256xf32>
    %211 = math.exp %210 : vector<4x256xf32>
    %cst_25 = arith.constant 1.000000e+00 : f32
    %212 = vector.broadcast %cst_25 : f32 to vector<4x256xf32>
    %213 = arith.subf %211, %212 : vector<4x256xf32>
    %214 = arith.select %208, %206, %213 : vector<4x256xi1>, vector<4x256xf32>
    %c0_26 = arith.constant 0 : index
    %c0_27 = arith.constant 0 : index
    %c0_28 = arith.constant 0 : index
    %215 = vector.load %arg6[%c0_26, %c0_27, %c0_28] : memref<1x4x256xf32, #tpu.memory_space<vmem>>, vector<1x4x256xf32>
    %216 = vector.shape_cast %215 : vector<1x4x256xf32> to vector<4x256xf32>
    %217 = vector.shape_cast %214 : vector<4x256xf32> to vector<1x4x256xf32>
    tpu.vector_store %arg6[%c0_26, %c0_27, %c0_28], %217 {strides = array<i32>} : memref<1x4x256xf32, #tpu.memory_space<vmem>>, vector<1x4x256xf32>,
    return
  }
  func.func @transform_0(%arg0: i32) -> (i32, i32, i32) {
    %c0_i32 = arith.constant 0 : i32
    %c0_i32_0 = arith.constant 0 : i32
    %c0_i32_1 = arith.constant 0 : i32
    return %arg0, %c0_i32, %c0_i32_0 : i32, i32, i32
  }
  func.func @transform_1(%arg0: i32) -> (i32, i32, i32) {
    %c0_i32 = arith.constant 0 : i32
    %c0_i32_0 = arith.constant 0 : i32
    %c0_i32_1 = arith.constant 0 : i32
    %c0_i32_2 = arith.constant 0 : i32
    return %c0_i32, %c0_i32_0, %c0_i32_1 : i32, i32, i32
  }
  func.func @transform_2(%arg0: i32) -> (i32, i32, i32) {
    %c0_i32 = arith.constant 0 : i32
    %c0_i32_0 = arith.constant 0 : i32
    %c0_i32_1 = arith.constant 0 : i32
    %c0_i32_2 = arith.constant 0 : i32
    return %c0_i32, %c0_i32_0, %c0_i32_1 : i32, i32, i32
  }
  func.func @transform_3(%arg0: i32) -> (i32, i32, i32, i32) {
    %c0_i32 = arith.constant 0 : i32
    %c0_i32_0 = arith.constant 0 : i32
    %c0_i32_1 = arith.constant 0 : i32
    %c0_i32_2 = arith.constant 0 : i32
    %c0_i32_3 = arith.constant 0 : i32
    return %c0_i32, %c0_i32_0, %c0_i32_1, %c0_i32_2 : i32, i32, i32, i32
  }
  func.func @transform_4(%arg0: i32) -> (i32, i32, i32, i32) {
    %c0_i32 = arith.constant 0 : i32
    %c0_i32_0 = arith.constant 0 : i32
    %c0_i32_1 = arith.constant 0 : i32
    %c0_i32_2 = arith.constant 0 : i32
    %c0_i32_3 = arith.constant 0 : i32
    return %c0_i32, %c0_i32_0, %c0_i32_1, %c0_i32_2 : i32, i32, i32, i32
  }
  func.func @transform_5(%arg0: i32) -> (i32, i32, i32) {
    %c0_i32 = arith.constant 0 : i32
    %c0_i32_0 = arith.constant 0 : i32
    %c0_i32_1 = arith.constant 0 : i32
    return %arg0, %c0_i32, %c0_i32_0 : i32, i32, i32
  }
}

</mosaic_0001>

<llo_original>
// kernel: tpu_custom_call.1
$region0: #{tpu_custom_call.1}
  #allocation0 [shape = 'u32[]', space=smem, size = 0x4, offset = 0x4, fixed_abs, tag = 'smem constant byte address 0x4 - core index']
  #allocation1 [shape = 'u32[72,128]{1,0:T(1,128)}', space=vmem, size = 0x9000, scoped, tag = 'internal scratch']
  %s0 = inlined_call_operand.hbm [shape: f32[8,384], index: 0, kind: input, shape index: {}]
  %s1 = inlined_call_operand.hbm [shape: f32[8,384], index: 1, kind: output, shape index: {}]
  %s2 = sld [smem:[#allocation0]]
  $region18: #{tpu_custom_call.1} parent=0
    _
  %s4 = ssub.s32 1, %s2
  %s5 = scalar_select 0, %s4, %s2
  $region1: #{tpu_custom_call.1} parent=0
    #allocation2 [shape = 'u8[12288]{0}', space=vmem, size = 0x3000, scoped, tag = 'input window, operand 0, single buffered']
    #allocation3 [shape = 's32[1]{0}', space=sflag, size = 0x4, scoped, tag = 'scoped memory for tpu_custom_call.1']
    #allocation4 [shape = 's32[1]{0}', space=sflag, size = 0x4, scoped, tag = 'scoped memory for tpu_custom_call.1']
    #allocation5 [shape = 'u8[12288]{0}', space=vmem, size = 0x3000, scoped, tag = 'output window, operand 0, single buffered']
    %6 = vsyncpa [#allocation3], 0
    %7 = vsyncpa [#allocation4], 0
    // Predicated region
    $region2: #{tpu_custom_call.1} parent=1 // pred_check
      _
    $region3: #{tpu_custom_call.1} parent=1 // pred_check_branch
      %9 = sbr.rel (0) target = $region5
    $region4: #{tpu_custom_call.1} parent=1 // pred_region
      %11 = vsyncadd [#allocation3], 0
      %s13 = sshll.u32 %s0, 4
      %s14 = int_to_ptr.hbm [resolvable:$true] %s13
      %s15 = sshll.u32 [#allocation2], 4
      %s16 = int_to_ptr.vmem [resolvable:$true] %s15
      %18 = dma.hbm_to_vmem [thread:$0]  %s14, 384, %s16, [#allocation3]
    $region5: #{tpu_custom_call.1} parent=1 // pred_fallthru
      _
    // Predicated region
    $region6: #{tpu_custom_call.1} parent=1 // pred_check
      _
    $region7: #{tpu_custom_call.1} parent=1 // pred_check_branch
      %20 = sbr.rel (0) target = $region9
    $region8: #{tpu_custom_call.1} parent=1 // pred_region
      %22 = dma.done [#allocation3], 384
    $region9: #{tpu_custom_call.1} parent=1 // pred_fallthru
      _
    %v23 = vld [vmem:[#allocation2] sm:$0xff]
    %v24 = vld [vmem:[#allocation2 + $0x8] sm:$0xff]
    %v25 = vld [vmem:[#allocation2 + $0x10] sm:$0xff]
    %26 = vrot.lane.b32.xlu0 %v23, 112
    %v27 = vpop.permute.xlu0 %26
    %28 = vrot.lane.b32.xlu0 %v24, 112
    %v29 = vpop.permute.xlu0 %28
    %30 = vrot.lane.b32.xlu0 %v25, 112
    %v31 = vpop.permute.xlu0 %30
    %v32 = vlaneseq
    %v33 = vand.u32 %v32, 127
    %vm34 = vcmp.lt.s32.totalorder %v33, 112
    %v35 = vsel %vm34, %v29, %v31
    %v36 = vsel %vm34, %v27, %v29
    %v37 = vsel %vm34, %v31, %v27
    %38 = vst [vmem:[#allocation5] sm:$0xff] %v36
    %39 = vst [vmem:[#allocation5 + $0x8] sm:$0xff] %v35
    %40 = vst [vmem:[#allocation5 + $0x10] sm:$0xff] %v37
    // Predicated region
    $region10: #{tpu_custom_call.1} parent=1 // pred_check
      _
    $region11: #{tpu_custom_call.1} parent=1 // pred_check_branch
      %42 = sbr.rel (0) target = $region13
    $region12: #{tpu_custom_call.1} parent=1 // pred_region
      %44 = vsyncadd [#allocation4], 0
      %s46 = sshll.u32 [#allocation5], 4
      %s47 = int_to_ptr.vmem [resolvable:$true] %s46
      %s48 = sshll.u32 %s1, 4
      %s49 = int_to_ptr.hbm [resolvable:$true] %s48
      %51 = dma.vmem_to_hbm [thread:$0]  %s47, 384, %s49, [#allocation4]
    $region13: #{tpu_custom_call.1} parent=1 // pred_fallthru
      _
    // Predicated region
    $region14: #{tpu_custom_call.1} parent=1 // pred_check
      _
    $region15: #{tpu_custom_call.1} parent=1 // pred_check_branch
      %53 = sbr.rel (0) target = $region17
    $region16: #{tpu_custom_call.1} parent=1 // pred_region
      %55 = dma.done [#allocation4], 384
    $region17: #{tpu_custom_call.1} parent=1 // pred_fallthru
      _
    %56 = vsyncpa [#allocation3], 1
    %57 = vsyncpa [#allocation4], 1

// kernel: tpu_custom_call.1
$region0: #{tpu_custom_call.1}
  #allocation0 [shape = 'u32[]', space=smem, size = 0x4, offset = 0x4, fixed_abs, tag = 'smem constant byte address 0x4 - core index']
  #allocation1 [shape = 'u32[72,128]{1,0:T(1,128)}', space=vmem, size = 0x9000, scoped, tag = 'internal scratch']
  %s0 = inlined_call_operand.vmem [shape: f32[2,4,256], index: 0, kind: input, shape index: {}]
  %s1 = inlined_call_operand.vmem [shape: f32[3,1,256], index: 1, kind: input, shape index: {}]
  %s2 = inlined_call_operand.vmem [shape: f32[3,1,256], index: 2, kind: input, shape index: {}]
  %s3 = inlined_call_operand.vmem [shape: f32[3,4,4,1], index: 3, kind: input, shape index: {}]
  %s4 = inlined_call_operand.vmem [shape: f32[3,4,4,1], index: 4, kind: input, shape index: {}]
  %s5 = inlined_call_operand.hbm [shape: f32[2,4,256], index: 5, kind: output, shape index: {}]
  %s6 = sld [smem:[#allocation0]]
  $region53: #{tpu_custom_call.1} parent=0
    _
  %s8 = ssub.s32 1, %s6
  %s9 = scalar_select 0, %s8, %s6
  $region1: #{tpu_custom_call.1} parent=0
    #allocation2 [shape = 'u8[8192]{0}', space=vmem, size = 0x2000, scoped, tag = 'output window, operand 0']
    #allocation3 [shape = 's32[2]{0}', space=sflag, size = 0x8, scoped, tag = 'scoped memory for tpu_custom_call.1']
    %10 = vsyncpa [#allocation3], 0
    %s11 = scalar_lea.sflag [#allocation3], 1
    %12 = vsyncpa %s11, 0
    loop: start=0, step=1, limit=4
    $region2: #{tpu_custom_call.1} parent=1 // loop_pre_header
      _
    $region3: #{tpu_custom_call.1} parent=1 // loop_header
      %s14 = sphi 0, %s18
      %p15 = scmp.ge.s32.totalorder %s14, 4
      %s24 = sphi 0, %s26
      %s27 = sphi 0, %s24
      %s28 = sphi 0, %s27
      %s44 = sphi 0, %s28
      %s48 = sphi 0, %s48
      %s50 = sphi 0, %s48
      %s51 = sphi 0, %s50
      %s65 = sphi 0, %s51
      %s69 = sphi 0, %s69
      %s71 = sphi 0, %s69
      %s72 = sphi 0, %s71
      %s86 = sphi 0, %s72
      %s90 = sphi 0, %s90
      %s92 = sphi 0, %s90
      %s93 = sphi 0, %s92
      %s107 = sphi 0, %s93
      %s111 = sphi 0, %s111
      %s113 = sphi 0, %s111
      %s114 = sphi 0, %s113
      %s128 = sphi 0, %s114
      %s134 = sphi 0, %s136
      %s137 = sphi 0, %s134
      %s138 = sphi 0, %s137
      %s154 = sphi 0, %s138
    $region4: #{tpu_custom_call.1} parent=1 // loop_header_branch
      %17 = sbr.rel (%p15) target = $region8
    $region5: #{tpu_custom_call.1} parent=1 // loop_body
      %s19 = ssub.s32 %s14, 1
      %s20 = ssub.s32 %s14, 2
      %s21 = sadd.s32 %s14, 1
      %s22 = ssub.s32 %s14, %s21
      %p23 = scmp.eq.s32.totalorder %s22, 0
      %s25 = sadd.s32 %s24, 1
      %s26 = scalar_select %p23, %s24, %s25
      %p29 = pneg %p23
      %p30 = scmp.eq.s32.totalorder %s14, 1
      %p31 = por %p29, %p30
      %p32 = scmp.ne.s32.totalorder %s24, %s27
      %p33 = scmp.eq.s32.totalorder %s14, 0
      %p34 = por %p32, %p33
      %p35 = scmp.ne.s32.totalorder %s24, %s27
      %p36 = scmp.eq.s32.totalorder %s19, 1
      %p37 = por %p35, %p36
      %p38 = scmp.ne.s32.totalorder %s27, %s28
      %p39 = scmp.eq.s32.totalorder %s19, 0
      %p40 = por %p38, %p39
      %p41 = scmp.ne.s32.totalorder %s27, %s28
      %p42 = scmp.eq.s32.totalorder %s20, 1
      %p43 = por %p41, %p42
      %p45 = scmp.ne.s32.totalorder %s28, %s44
      %p46 = scmp.eq.s32.totalorder %s20, 0
      %p47 = por %p45, %p46
      %s49 = sadd.s32 %s48, 1
      %p52 = scmp.eq.s32.totalorder %s14, 1
      %p53 = scmp.ne.s32.totalorder %s48, %s50
      %p54 = scmp.eq.s32.totalorder %s14, 0
      %p55 = por %p53, %p54
      %p56 = scmp.ne.s32.totalorder %s48, %s50
      %p57 = scmp.eq.s32.totalorder %s19, 1
      %p58 = por %p56, %p57
      %p59 = scmp.ne.s32.totalorder %s50, %s51
      %p60 = scmp.eq.s32.totalorder %s19, 0
      %p61 = por %p59, %p60
      %p62 = scmp.ne.s32.totalorder %s50, %s51
      %p63 = scmp.eq.s32.totalorder %s20, 1
      %p64 = por %p62, %p63
      %p66 = scmp.ne.s32.totalorder %s51, %s65
      %p67 = scmp.eq.s32.totalorder %s20, 0
      %p68 = por %p66, %p67
      %s70 = sadd.s32 %s69, 1
      %p73 = scmp.eq.s32.totalorder %s14, 1
      %p74 = scmp.ne.s32.totalorder %s69, %s71
      %p75 = scmp.eq.s32.totalorder %s14, 0
      %p76 = por %p74, %p75
      %p77 = scmp.ne.s32.totalorder %s69, %s71
      %p78 = scmp.eq.s32.totalorder %s19, 1
      %p79 = por %p77, %p78
      %p80 = scmp.ne.s32.totalorder %s71, %s72
      %p81 = scmp.eq.s32.totalorder %s19, 0
      %p82 = por %p80, %p81
      %p83 = scmp.ne.s32.totalorder %s71, %s72
      %p84 = scmp.eq.s32.totalorder %s20, 1
      %p85 = por %p83, %p84
      %p87 = scmp.ne.s32.totalorder %s72, %s86
      %p88 = scmp.eq.s32.totalorder %s20, 0
      %p89 = por %p87, %p88
      %s91 = sadd.s32 %s90, 1
      %p94 = scmp.eq.s32.totalorder %s14, 1
      %p95 = scmp.ne.s32.totalorder %s90, %s92
      %p96 = scmp.eq.s32.totalorder %s14, 0
      %p97 = por %p95, %p96
      %p98 = scmp.ne.s32.totalorder %s90, %s92
      %p99 = scmp.eq.s32.totalorder %s19, 1
      %p100 = por %p98, %p99
      %p101 = scmp.ne.s32.totalorder %s92, %s93
      %p102 = scmp.eq.s32.totalorder %s19, 0
      %p103 = por %p101, %p102
      %p104 = scmp.ne.s32.totalorder %s92, %s93
      %p105 = scmp.eq.s32.totalorder %s20, 1
      %p106 = por %p104, %p105
      %p108 = scmp.ne.s32.totalorder %s93, %s107
      %p109 = scmp.eq.s32.totalorder %s20, 0
      %p110 = por %p108, %p109
      %s112 = sadd.s32 %s111, 1
      %p115 = scmp.eq.s32.totalorder %s14, 1
      %p116 = scmp.ne.s32.totalorder %s111, %s113
      %p117 = scmp.eq.s32.totalorder %s14, 0
      %p118 = por %p116, %p117
      %p119 = scmp.ne.s32.totalorder %s111, %s113
      %p120 = scmp.eq.s32.totalorder %s19, 1
      %p121 = por %p119, %p120
      %p122 = scmp.ne.s32.totalorder %s113, %s114
      %p123 = scmp.eq.s32.totalorder %s19, 0
      %p124 = por %p122, %p123
      %p125 = scmp.ne.s32.totalorder %s113, %s114
      %p126 = scmp.eq.s32.totalorder %s20, 1
      %p127 = por %p125, %p126
      %p129 = scmp.ne.s32.totalorder %s114, %s128
      %p130 = scmp.eq.s32.totalorder %s20, 0
      %p131 = por %p129, %p130
      %s132 = ssub.s32 %s14, %s21
      %p133 = scmp.eq.s32.totalorder %s132, 0
      %s135 = sadd.s32 %s134, 1
      %s136 = scalar_select %p133, %s134, %s135
      %p139 = pneg %p133
      %p140 = scmp.eq.s32.totalorder %s14, 1
      %p141 = por %p139, %p140
      %p142 = scmp.ne.s32.totalorder %s134, %s137
      %p143 = scmp.eq.s32.totalorder %s14, 0
      %p144 = por %p142, %p143
      %p145 = scmp.ne.s32.totalorder %s134, %s137
      %p146 = scmp.eq.s32.totalorder %s19, 1
      %p147 = por %p145, %p146
      %p148 = scmp.ne.s32.totalorder %s137, %s138
      %p149 = scmp.eq.s32.totalorder %s19, 0
      %p150 = por %p148, %p149
      %p151 = scmp.ne.s32.totalorder %s137, %s138
      %p152 = scmp.eq.s32.totalorder %s20, 1
      %p153 = por %p151, %p152
      %p155 = scmp.ne.s32.totalorder %s138, %s154
      %p156 = scmp.eq.s32.totalorder %s20, 0
      %p157 = por %p155, %p156
      %p158 = scmp.le.s32.totalorder 1, %s14
      %p159 = scmp.lt.s32.totalorder %s14, 3
      %p160 = pnand %p158, %p159
      %p161 = pneg %p160
      // Predicated region
      $region9: #{tpu_custom_call.1} parent=5 // pred_check
        _
      $region10: #{tpu_custom_call.1} parent=5 // pred_check_branch
        %163 = sbr.rel (%p160) target = $region12
      $region11: #{tpu_custom_call.1} parent=5 // pred_region
        %s164 = ssub.s32 %s14, 1
        // Predicated region
        $region13: #{tpu_custom_call.1} parent=11 // pred_check
          %p165 = pneg %p61
        $region14: #{tpu_custom_call.1} parent=11 // pred_check_branch
          %167 = sbr.rel (%p165) target = $region16
        $region15: #{tpu_custom_call.1} parent=11 // pred_region
          _
        $region16: #{tpu_custom_call.1} parent=11 // pred_fallthru
          _
        // Predicated region
        $region17: #{tpu_custom_call.1} parent=11 // pred_check
          %p168 = pneg %p82
        $region18: #{tpu_custom_call.1} parent=11 // pred_check_branch
          %170 = sbr.rel (%p168) target = $region20
        $region19: #{tpu_custom_call.1} parent=11 // pred_region
          _
        $region20: #{tpu_custom_call.1} parent=11 // pred_fallthru
          _
        // Predicated region
        $region21: #{tpu_custom_call.1} parent=11 // pred_check
          %p171 = pneg %p103
        $region22: #{tpu_custom_call.1} parent=11 // pred_check_branch
          %173 = sbr.rel (%p171) target = $region24
        $region23: #{tpu_custom_call.1} parent=11 // pred_region
          _
        $region24: #{tpu_custom_call.1} parent=11 // pred_fallthru
          _
        // Predicated region
        $region25: #{tpu_custom_call.1} parent=11 // pred_check
          %p174 = pneg %p124
        $region26: #{tpu_custom_call.1} parent=11 // pred_check_branch
          %176 = sbr.rel (%p174) target = $region28
        $region27: #{tpu_custom_call.1} parent=11 // pred_region
          _
        $region28: #{tpu_custom_call.1} parent=11 // pred_fallthru
          _
      $region12: #{tpu_custom_call.1} parent=5 // pred_fallthru
        _
      %p177 = scmp.lt.s32.totalorder %s14, 2
      // Predicated region
      $region29: #{tpu_custom_call.1} parent=5 // pred_check
        %p178 = pneg %p177
      $region30: #{tpu_custom_call.1} parent=5 // pred_check_branch
        %180 = sbr.rel (%p178) target = $region32
      $region31: #{tpu_custom_call.1} parent=5 // pred_region
        // Predicated region
        $region33: #{tpu_custom_call.1} parent=31 // pred_check
          %p181 = pneg %p34
        $region34: #{tpu_custom_call.1} parent=31 // pred_check_branch
          %183 = sbr.rel (%p181) target = $region36
        $region35: #{tpu_custom_call.1} parent=31 // pred_region
          %p184 = scmp.lt.s32.totalorder %s14, 1
          %s185 = scalar_select %p184, %s14, 1
          %s186 = smul.addr %s185, 2
          %s187 = smul.addr %s186, 4
          %s188 = scalar_lea.vmem %s0, %s187
        $region36: #{tpu_custom_call.1} parent=31 // pred_fallthru
          _
      $region32: #{tpu_custom_call.1} parent=5 // pred_fallthru
        _
      %p189 = scmp.le.s32.totalorder 1, %s14
      %p190 = scmp.lt.s32.totalorder %s14, 3
      %p191 = pnand %p189, %p190
      %p192 = pneg %p191
      // Predicated region
      $region37: #{tpu_custom_call.1} parent=5 // pred_check
        _
      $region38: #{tpu_custom_call.1} parent=5 // pred_check_branch
        %194 = sbr.rel (%p191) target = $region40
      $region39: #{tpu_custom_call.1} parent=5 // pred_region
        %s195 = ssub.s32 %s14, 1
        %p196 = scmp.lt.s32.totalorder %s19, 1
        %s197 = scalar_select %p196, %s19, 1
        %s198 = smul.addr %s197, 2
        %s199 = smul.addr %s198, 4
        %s200 = scalar_lea.vmem %s0, %s199
        %p201 = pneg %p40
        %p202 = pneg %p37
        %p203 = pneg %p61
        %p204 = pneg %p58
        %p205 = pneg %p82
        %p206 = pneg %p79
        %p207 = pneg %p103
        %p208 = pneg %p100
        %p209 = pneg %p124
        %p210 = pneg %p121
        %p211 = pneg %p150
        %p212 = pneg %p147
        %s213 = sand.u32 %s137, 1
        %s214 = scalar_lea.sflag [#allocation3], %s213
        %s215 = sand.u32 %s137, 1
        %s216 = smul.addr %s215, 8
        %s217 = scalar_lea.vmem [#allocation2], %s216
        %p218 = scmp.lt.s32.totalorder %s19, 1
        %s219 = scalar_select %p218, %s19, 1
        %s220 = smul.addr %s219, 2
        %s221 = smul.addr %s220, 4
        %s222 = scalar_lea.vmem %s0, %s221
        %v223 = vld [vmem:[%s222] sm:$0xff]
        %v224 = vld [vmem:[%s3] sm:$0xf]
        %v225 = vld [vmem:[%s3 + $0x4] sm:$0xf]
        %v226 = vld [vmem:[%s3 + $0x8] sm:$0xf]
        %v227 = vld [vmem:[%s3 + $0xc] sm:$0xf]
        %v228 = vld [vmem:[%s3 + $0x10] sm:$0xf]
        %v229 = vld [vmem:[%s3 + $0x14] sm:$0xf]
        %v230 = vld [vmem:[%s3 + $0x18] sm:$0xf]
        %v231 = vld [vmem:[%s3 + $0x1c] sm:$0xf]
        %v232 = vld [vmem:[%s3 + $0x20] sm:$0xf]
        %v233 = vld [vmem:[%s3 + $0x24] sm:$0xf]
        %v234 = vld [vmem:[%s3 + $0x28] sm:$0xf]
        %v235 = vld [vmem:[%s3 + $0x2c] sm:$0xf]
        %v236 = vld [vmem:[%s4] sm:$0xf]
        %v237 = vld [vmem:[%s4 + $0x4] sm:$0xf]
        %v238 = vld [vmem:[%s4 + $0x8] sm:$0xf]
        %v239 = vld [vmem:[%s4 + $0xc] sm:$0xf]
        %v240 = vld [vmem:[%s4 + $0x10] sm:$0xf]
        %v241 = vld [vmem:[%s4 + $0x14] sm:$0xf]
        %v242 = vld [vmem:[%s4 + $0x18] sm:$0xf]
        %v243 = vld [vmem:[%s4 + $0x1c] sm:$0xf]
        %v244 = vld [vmem:[%s4 + $0x20] sm:$0xf]
        %v245 = vld [vmem:[%s4 + $0x24] sm:$0xf]
        %v246 = vld [vmem:[%s4 + $0x28] sm:$0xf]
        %v247 = vld [vmem:[%s4 + $0x2c] sm:$0xf]
        %249 = vst [vmem:[#allocation1] ss:$2 sm:$0xff] %v223
        %v250 = vld.sshfl [vmem:[#allocation1 + $0x8] sm:$0xff pattern:$0x75316420]
        %251 = vrot.lane.b32.xlu0 %v250, 16
        %v252 = vpop.permute.xlu0 %251
        %254 = vst [vmem:[#allocation1] ss:$2 sm:$0xff] %v223
        %v255 = vld.sshfl [vmem:[#allocation1] sm:$0xff pattern:$0x75316420]
        %v256 = vld.sshfl [vmem:[#allocation1 + $0x8] sm:$0xff pattern:$0x75316420]
        %257 = vrot.lane.b32.xlu0 %v255, 16
        %v258 = vpop.permute.xlu0 %257
        %259 = vrot.lane.b32.xlu0 %v256, 16
        %v260 = vpop.permute.xlu0 %259
        %vm261 = vcmask 130048
        %v262 = vsel %vm261, %v258, %v260
        %v265 = vsel %vm261, %v252, %v258
        %v266 = vld [vmem:[%s1] sm:$0x3]
        %v268 = vperm.slane %v266, 0
        %v269 = vperm.slane %v266, 1
        %v272 = vmul.f32 %v265, %v268
        %v273 = vmul.f32 %v262, %v269
        %275 = vset.pattern.permute.xlu0 0
        %276 = vperm.xlu0 %275, %v224
        %v277 = vpop.permute.xlu0 %276
        %v279 = vperm.slane %v272, 0
        %v280 = vperm.slane %v273, 0
        %v281 = vmul.f32 %v277, %v279
        %v282 = vmul.f32 %v277, %v280
        %284 = vset.pattern.permute.xlu0 0
        %285 = vperm.xlu0 %284, %v225
        %v286 = vpop.permute.xlu0 %285
        %v288 = vperm.slane %v272, 1
        %v289 = vperm.slane %v273, 1
        %v290 = vmul.f32 %v286, %v288
        %v291 = vmul.f32 %v286, %v289
        %v292 = vadd.f32 %v281, %v290
        %v293 = vadd.f32 %v282, %v291
        %295 = vset.pattern.permute.xlu0 0
        %296 = vperm.xlu0 %295, %v226
        %v297 = vpop.permute.xlu0 %296
        %v299 = vperm.slane %v272, 2
        %v300 = vperm.slane %v273, 2
        %v301 = vmul.f32 %v297, %v299
        %v302 = vmul.f32 %v297, %v300
        %v303 = vadd.f32 %v292, %v301
        %v304 = vadd.f32 %v293, %v302
        %306 = vset.pattern.permute.xlu0 0
        %307 = vperm.xlu0 %306, %v227
        %v308 = vpop.permute.xlu0 %307
        %v310 = vperm.slane %v272, 3
        %v311 = vperm.slane %v273, 3
        %v312 = vmul.f32 %v308, %v310
        %v313 = vmul.f32 %v308, %v311
        %v314 = vadd.f32 %v303, %v312
        %v315 = vadd.f32 %v304, %v313
        %317 = vset.pattern.permute.xlu0 0
        %318 = vperm.xlu0 %317, %v228
        %v319 = vpop.permute.xlu0 %318
        %v321 = vperm.slane %v223, 0
        %v322 = vperm.slane %v223, 4
        %v325 = vperm.slane %v321, 0
        %v326 = vperm.slane %v322, 0
        %v327 = vmul.f32 %v319, %v325
        %v328 = vmul.f32 %v319, %v326
        %330 = vset.pattern.permute.xlu0 0
        %331 = vperm.xlu0 %330, %v229
        %v332 = vpop.permute.xlu0 %331
        %v334 = vperm.slane %v223, 1
        %v335 = vperm.slane %v223, 5
        %v338 = vperm.slane %v334, 1
        %v339 = vperm.slane %v335, 1
        %v340 = vmul.f32 %v332, %v338
        %v341 = vmul.f32 %v332, %v339
        %v342 = vadd.f32 %v327, %v340
        %v343 = vadd.f32 %v328, %v341
        %345 = vset.pattern.permute.xlu0 0
        %346 = vperm.xlu0 %345, %v230
        %v347 = vpop.permute.xlu0 %346
        %v349 = vperm.slane %v223, 2
        %v350 = vperm.slane %v223, 6
        %v353 = vperm.slane %v349, 2
        %v354 = vperm.slane %v350, 2
        %v355 = vmul.f32 %v347, %v353
        %v356 = vmul.f32 %v347, %v354
        %v357 = vadd.f32 %v342, %v355
        %v358 = vadd.f32 %v343, %v356
        %360 = vset.pattern.permute.xlu0 0
        %361 = vperm.xlu0 %360, %v231
        %v362 = vpop.permute.xlu0 %361
        %v364 = vperm.slane %v223, 3
        %v365 = vperm.slane %v223, 7
        %v368 = vperm.slane %v364, 3
        %v369 = vperm.slane %v365, 3
        %v370 = vmul.f32 %v362, %v368
        %v371 = vmul.f32 %v362, %v369
        %v372 = vadd.f32 %v357, %v370
        %v373 = vadd.f32 %v358, %v371
        %v374 = vadd.f32 %v314, %v372
        %v375 = vadd.f32 %v315, %v373
        %376 = vst [vmem:[#allocation1] ss:$2 sm:$0xff] %v223
        %v377 = vld.sshfl [vmem:[#allocation1] sm:$0xff pattern:$0x75316420]
        %v378 = vld.sshfl [vmem:[#allocation1 + $0x8] sm:$0xff pattern:$0x75316420]
        %379 = vrot.lane.b32.xlu0 %v377, 112
        %v380 = vpop.permute.xlu0 %379
        %381 = vrot.lane.b32.xlu0 %v378, 112
        %v382 = vpop.permute.xlu0 %381
        %vm383 = vcmask 916480
        %v384 = vsel %vm383, %v380, %v382
        %387 = vst [vmem:[#allocation1] ss:$2 sm:$0xff] %v223
        %v388 = vld.sshfl [vmem:[#allocation1] sm:$0xff pattern:$0x75316420]
        %389 = vrot.lane.b32.xlu0 %v388, 112
        %v390 = vpop.permute.xlu0 %389
        %v392 = vsel %vm383, %v382, %v390
        %s393 = scalar_lea.vmem %s1, 4
        %v394 = vld [vmem:[%s393] sm:$0x3]
        %v396 = vperm.slane %v394, 0
        %v397 = vperm.slane %v394, 1
        %v400 = vmul.f32 %v384, %v396
        %v401 = vmul.f32 %v392, %v397
        %403 = vset.pattern.permute.xlu0 0
        %404 = vperm.xlu0 %403, %v232
        %v405 = vpop.permute.xlu0 %404
        %v407 = vperm.slane %v400, 0
        %v408 = vperm.slane %v401, 0
        %v409 = vmul.f32 %v405, %v407
        %v410 = vmul.f32 %v405, %v408
        %412 = vset.pattern.permute.xlu0 0
        %413 = vperm.xlu0 %412, %v233
        %v414 = vpop.permute.xlu0 %413
        %v416 = vperm.slane %v400, 1
        %v417 = vperm.slane %v401, 1
        %v418 = vmul.f32 %v414, %v416
        %v419 = vmul.f32 %v414, %v417
        %v420 = vadd.f32 %v409, %v418
        %v421 = vadd.f32 %v410, %v419
        %423 = vset.pattern.permute.xlu0 0
        %424 = vperm.xlu0 %423, %v234
        %v425 = vpop.permute.xlu0 %424
        %v427 = vperm.slane %v400, 2
        %v428 = vperm.slane %v401, 2
        %v429 = vmul.f32 %v425, %v427
        %v430 = vmul.f32 %v425, %v428
        %v431 = vadd.f32 %v420, %v429
        %v432 = vadd.f32 %v421, %v430
        %434 = vset.pattern.permute.xlu0 0
        %435 = vperm.xlu0 %434, %v235
        %v436 = vpop.permute.xlu0 %435
        %v438 = vperm.slane %v400, 3
        %v439 = vperm.slane %v401, 3
        %v440 = vmul.f32 %v436, %v438
        %v441 = vmul.f32 %v436, %v439
        %v442 = vadd.f32 %v431, %v440
        %v443 = vadd.f32 %v432, %v441
        %v444 = vadd.f32 %v374, %v442
        %v445 = vadd.f32 %v375, %v443
        %vm446 = vcmp.gt.f32.partialorder %v444, 0.0
        %vm447 = vcmp.gt.f32.partialorder %v445, 0.0
        %v448 = vmin.f32 %v444, 0.0
        %v449 = vmin.f32 %v445, 0.0
        %v450 = vmul.f32 %v448, 1.442695
        %v451 = vpow.pop %v450
        %v452 = vmul.f32 %v449, 1.442695
        %v453 = vpow.pop %v452
        %v454 = vsub.f32 %v451, 1.0
        %v455 = vsub.f32 %v453, 1.0
        %v456 = vsel %vm446, %v444, %v454
        %v457 = vsel %vm447, %v445, %v455
        %459 = vrot.lane.b32.xlu0 %v457, 1
        %v460 = vpop.permute.xlu0 %459
        %463 = vrot.lane.b32.xlu0 %v456, 1
        %v464 = vpop.permute.xlu0 %463
        %vm465 = vcmask 7168
        %v466 = vsel %vm465, %v464, %v460
        %v469 = vsel %vm465, %v460, %v464
        %v470 = vld [vmem:[%s2] sm:$0x3]
        %v472 = vperm.slane %v470, 0
        %v473 = vperm.slane %v470, 1
        %v476 = vmul.f32 %v469, %v472
        %v477 = vmul.f32 %v466, %v473
        %479 = vset.pattern.permute.xlu0 0
        %480 = vperm.xlu0 %479, %v236
        %v481 = vpop.permute.xlu0 %480
        %v483 = vperm.slane %v476, 0
        %v484 = vperm.slane %v477, 0
        %v485 = vmul.f32 %v481, %v483
        %v486 = vmul.f32 %v481, %v484
        %488 = vset.pattern.permute.xlu0 0
        %489 = vperm.xlu0 %488, %v237
        %v490 = vpop.permute.xlu0 %489
        %v492 = vperm.slane %v476, 1
        %v493 = vperm.slane %v477, 1
        %v494 = vmul.f32 %v490, %v492
        %v495 = vmul.f32 %v490, %v493
        %v496 = vadd.f32 %v485, %v494
        %v497 = vadd.f32 %v486, %v495
        %499 = vset.pattern.permute.xlu0 0
        %500 = vperm.xlu0 %499, %v238
        %v501 = vpop.permute.xlu0 %500
        %v503 = vperm.slane %v476, 2
        %v504 = vperm.slane %v477, 2
        %v505 = vmul.f32 %v501, %v503
        %v506 = vmul.f32 %v501, %v504
        %v507 = vadd.f32 %v496, %v505
        %v508 = vadd.f32 %v497, %v506
        %510 = vset.pattern.permute.xlu0 0
        %511 = vperm.xlu0 %510, %v239
        %v512 = vpop.permute.xlu0 %511
        %v514 = vperm.slane %v476, 3
        %v515 = vperm.slane %v477, 3
        %v516 = vmul.f32 %v512, %v514
        %v517 = vmul.f32 %v512, %v515
        %v518 = vadd.f32 %v507, %v516
        %v519 = vadd.f32 %v508, %v517
        %521 = vset.pattern.permute.xlu0 0
        %522 = vperm.xlu0 %521, %v240
        %v523 = vpop.permute.xlu0 %522
        %v525 = vperm.slane %v456, 0
        %v526 = vperm.slane %v457, 0
        %v527 = vmul.f32 %v523, %v525
        %v528 = vmul.f32 %v523, %v526
        %530 = vset.pattern.permute.xlu0 0
        %531 = vperm.xlu0 %530, %v241
        %v532 = vpop.permute.xlu0 %531
        %v534 = vperm.slane %v456, 1
        %v535 = vperm.slane %v457, 1
        %v536 = vmul.f32 %v532, %v534
        %v537 = vmul.f32 %v532, %v535
        %v538 = vadd.f32 %v527, %v536
        %v539 = vadd.f32 %v528, %v537
        %541 = vset.pattern.permute.xlu0 0
        %542 = vperm.xlu0 %541, %v242
        %v543 = vpop.permute.xlu0 %542
        %v545 = vperm.slane %v456, 2
        %v546 = vperm.slane %v457, 2
        %v547 = vmul.f32 %v543, %v545
        %v548 = vmul.f32 %v543, %v546
        %v549 = vadd.f32 %v538, %v547
        %v550 = vadd.f32 %v539, %v548
        %552 = vset.pattern.permute.xlu0 0
        %553 = vperm.xlu0 %552, %v243
        %v554 = vpop.permute.xlu0 %553
        %v556 = vperm.slane %v456, 3
        %v557 = vperm.slane %v457, 3
        %v558 = vmul.f32 %v554, %v556
        %v559 = vmul.f32 %v554, %v557
        %v560 = vadd.f32 %v549, %v558
        %v561 = vadd.f32 %v550, %v559
        %v562 = vadd.f32 %v518, %v560
        %v563 = vadd.f32 %v519, %v561
        %564 = vrot.lane.b32.xlu0 %v456, 127
        %v565 = vpop.permute.xlu0 %564
        %566 = vrot.lane.b32.xlu0 %v457, 127
        %v567 = vpop.permute.xlu0 %566
        %vm568 = vcmask 1039360
        %v569 = vsel %vm568, %v565, %v567
        %v573 = vsel %vm568, %v567, %v565
        %s574 = scalar_lea.vmem %s2, 4
        %v575 = vld [vmem:[%s574] sm:$0x3]
        %v577 = vperm.slane %v575, 0
        %v578 = vperm.slane %v575, 1
        %v581 = vmul.f32 %v569, %v577
        %v582 = vmul.f32 %v573, %v578
        %584 = vset.pattern.permute.xlu0 0
        %585 = vperm.xlu0 %584, %v244
        %v586 = vpop.permute.xlu0 %585
        %v588 = vperm.slane %v581, 0
        %v589 = vperm.slane %v582, 0
        %v590 = vmul.f32 %v586, %v588
        %v591 = vmul.f32 %v586, %v589
        %593 = vset.pattern.permute.xlu0 0
        %594 = vperm.xlu0 %593, %v245
        %v595 = vpop.permute.xlu0 %594
        %v597 = vperm.slane %v581, 1
        %v598 = vperm.slane %v582, 1
        %v599 = vmul.f32 %v595, %v597
        %v600 = vmul.f32 %v595, %v598
        %v601 = vadd.f32 %v590, %v599
        %v602 = vadd.f32 %v591, %v600
        %604 = vset.pattern.permute.xlu0 0
        %605 = vperm.xlu0 %604, %v246
        %v606 = vpop.permute.xlu0 %605
        %v608 = vperm.slane %v581, 2
        %v609 = vperm.slane %v582, 2
        %v610 = vmul.f32 %v606, %v608
        %v611 = vmul.f32 %v606, %v609
        %v612 = vadd.f32 %v601, %v610
        %v613 = vadd.f32 %v602, %v611
        %615 = vset.pattern.permute.xlu0 0
        %616 = vperm.xlu0 %615, %v247
        %v617 = vpop.permute.xlu0 %616
        %v619 = vperm.slane %v581, 3
        %v620 = vperm.slane %v582, 3
        %v621 = vmul.f32 %v617, %v619
        %v622 = vmul.f32 %v617, %v620
        %v623 = vadd.f32 %v612, %v621
        %v624 = vadd.f32 %v613, %v622
        %v625 = vadd.f32 %v562, %v623
        %v626 = vadd.f32 %v563, %v624
        %627 = vst [vmem:[#allocation1] ss:$2 sm:$0xff] %v223
        %v628 = vld.sshfl [vmem:[#allocation1] sm:$0xff pattern:$0x75316420]
        %v629 = vld.sshfl [vmem:[#allocation1 + $0x8] sm:$0xff pattern:$0x75316420]
        %v632 = vadd.f32 %v625, %v628
        %v633 = vadd.f32 %v626, %v629
        %vm634 = vcmp.gt.f32.partialorder %v632, 0.0
        %vm635 = vcmp.gt.f32.partialorder %v633, 0.0
        %v636 = vmin.f32 %v632, 0.0
        %v637 = vmin.f32 %v633, 0.0
        %v638 = vmul.f32 %v636, 1.442695
        %v639 = vpow.pop %v638
        %v640 = vmul.f32 %v637, 1.442695
        %v641 = vpow.pop %v640
        %v642 = vsub.f32 %v639, 1.0
        %v643 = vsub.f32 %v641, 1.0
        %v644 = vsel %vm634, %v632, %v642
        %v645 = vsel %vm635, %v633, %v643
        %v648 = vrot.slane %v645, 4
        %vm649 = vcmask 1043456
        %v650 = vsel %vm649, %v644, %v648
        %652 = vst [vmem:[%s217] sm:$0xff] %v650
        %s653 = sand.u32 %s137, 1
        %s654 = scalar_lea.sflag [#allocation3], %s653
        %s655 = sand.u32 %s137, 1
        %s656 = smul.addr %s655, 8
        %s657 = scalar_lea.vmem [#allocation2], %s656
        // Predicated region
        $region41: #{tpu_custom_call.1} parent=39 // pred_check
          %p658 = pneg %p147
        $region42: #{tpu_custom_call.1} parent=39 // pred_check_branch
          %660 = sbr.rel (%p658) target = $region44
        $region43: #{tpu_custom_call.1} parent=39 // pred_region
          %662 = vsyncadd %s654, 0
          %s663 = smul.addr %s19, 2
          %s664 = smul.addr %s663, 4
          %s665 = scalar_lea.hbm %s5, %s664
          %s667 = sshll.u32 %s657, 4
          %s668 = int_to_ptr.vmem [resolvable:$true] %s667
          %s669 = sshll.u32 %s665, 4
          %s670 = int_to_ptr.hbm [resolvable:$true] %s669
          %672 = dma.vmem_to_hbm [thread:$0]  %s668, 128, %s670, %s654
        $region44: #{tpu_custom_call.1} parent=39 // pred_fallthru
          _
      $region40: #{tpu_custom_call.1} parent=5 // pred_fallthru
        _
      %p673 = scmp.le.s32.totalorder 2, %s14
      // Predicated region
      $region45: #{tpu_custom_call.1} parent=5 // pred_check
        %p674 = pneg %p673
      $region46: #{tpu_custom_call.1} parent=5 // pred_check_branch
        %676 = sbr.rel (%p674) target = $region48
      $region47: #{tpu_custom_call.1} parent=5 // pred_region
        %s677 = ssub.s32 %s14, 2
        // Predicated region
        $region49: #{tpu_custom_call.1} parent=47 // pred_check
          %p678 = pneg %p153
        $region50: #{tpu_custom_call.1} parent=47 // pred_check_branch
          %680 = sbr.rel (%p678) target = $region52
        $region51: #{tpu_custom_call.1} parent=47 // pred_region
          %s681 = sand.u32 %s138, 1
          %s682 = scalar_lea.sflag [#allocation3], %s681
          %s683 = sand.u32 %s138, 1
          %s684 = smul.addr %s683, 8
          %s685 = scalar_lea.vmem [#allocation2], %s684
          %687 = dma.done %s682, 128
        $region52: #{tpu_custom_call.1} parent=47 // pred_fallthru
          _
      $region48: #{tpu_custom_call.1} parent=5 // pred_fallthru
        _
    $region6: #{tpu_custom_call.1} parent=1 // loop_footer
      %s18 = sadd.s32 1, %s14
    $region7: #{tpu_custom_call.1} parent=1 // loop_footer_branch
      %13 = sbr.rel target = $region3
    $region8: #{tpu_custom_call.1} parent=1 // loop_exit
      _
    %688 = vsyncpa [#allocation3], 1
    %s689 = scalar_lea.sflag [#allocation3], 1
    %690 = vsyncpa %s689, 1

</llo_original>
